<compile_context>
chip_gen: v7x
topology: tpu7x:2x2x1
jax: 0.10.0
libtpu: 0.0.40
codegen_flags: <defaults>
</compile_context>

<pallas_src>
import math

import jax
import jax.numpy as jnp
from jax.experimental import pallas as pl
from jax.experimental.pallas import tpu as pltpu

DIM = 3
IN_FEATURES = DIM * 10                    # 30
H1 = 64
H2 = 32
OUT_FEATURES = 2 ** DIM - DIM             # 5
CHOICES = 2 ** DIM - DIM - 1              # 4
OUT_W = 8                                 # output lanes (5 used, 3 zero pad)
MAX_TILE_B = 2048                         # cap on batch rows per grid step


def _hironaka_kernel(x_ref, w1_ref, b1_ref, w2_ref, b2_ref, w3_ref, b3_ref,
                     o_ref):
    # x_ref: (TILE_B, 30) f32. Weights bf16 (in, out); biases f32 (1, out).
    # w3/b3 are zero-padded on the lane axis to OUT_W=8 so logits lanes 5..7
    # are exactly zero; the wrapper slices [:, :5].
    x = x_ref[...].astype(jnp.bfloat16)

    h1 = jnp.dot(x, w1_ref[...], preferred_element_type=jnp.float32)
    h1 = jnp.maximum(h1 + b1_ref[...], 0.0)            # f32 elementwise

    h2 = jnp.dot(h1.astype(jnp.bfloat16), w2_ref[...],
                 preferred_element_type=jnp.float32)
    h2 = jnp.maximum(h2 + b2_ref[...], 0.0)

    logits = jnp.dot(h2.astype(jnp.bfloat16), w3_ref[...],
                     preferred_element_type=jnp.float32) + b3_ref[...]
    # logits: (TILE_B, 8); lanes 0..3 = prob logits, lane 4 = reward,
    # lanes 5..7 = 0 (zero-padded weights/bias).

    # Softmax over the first CHOICES lanes via static slices (no iota/where).
    # Exact f32 division so probabilities sum to 1 to f32 precision (the
    # approximate EUP reciprocal violated the 2e-3 normalization tolerance).
    prob_logits = logits[:, 0:CHOICES]                  # (TILE_B, 4)
    m = jnp.max(prob_logits, axis=1, keepdims=True)
    e = jnp.exp(prob_logits - m)
    s = jnp.sum(e, axis=1, keepdims=True)
    probs = e / s

    o_ref[...] = logits                                 # 8-lane store
    o_ref[:, 0:CHOICES] = probs                         # overwrite prob lanes
    # TODO(synk): if xprof at TILE_B>=2048 shows VMEM spill ld/st competing
    # with the pipeline DMA, chunk the tile with an inner lax.fori_loop over
    # 256-row pl.ds sub-slices (follow-up only if measured; DMA is the wall).


def init_params(key):
    """Deterministic init mirroring nn.Linear's U(-1/sqrt(fan_in), +1/sqrt(fan_in)).

    Weights are (in_features, out_features) float32; biases are (1, out)."""
    ks = jax.random.split(key, 6)

    def linear(kw, kb, fan_in, fan_out):
        bound = 1.0 / math.sqrt(fan_in)
        w = jax.random.uniform(kw, (fan_in, fan_out), jnp.float32,
                               minval=-bound, maxval=bound)
        b = jax.random.uniform(kb, (1, fan_out), jnp.float32,
                               minval=-bound, maxval=bound)
        return w, b

    w1, b1 = linear(ks[0], ks[1], IN_FEATURES, H1)
    w2, b2 = linear(ks[2], ks[3], H1, H2)
    w3, b3 = linear(ks[4], ks[5], H2, OUT_FEATURES)
    return (w1, b1, w2, b2, w3, b3)


def _pack_params(params):
    """bf16 weights + 8-lane-padded final layer; biases stay f32."""
    w1, b1, w2, b2, w3, b3 = params
    w3p = jnp.zeros((H2, OUT_W), jnp.float32).at[:, :OUT_FEATURES].set(w3)
    b3p = jnp.zeros((1, OUT_W), jnp.float32).at[:, :OUT_FEATURES].set(b3)
    return (w1.astype(jnp.bfloat16), b1.astype(jnp.float32),
            w2.astype(jnp.bfloat16), b2.astype(jnp.float32),
            w3p.astype(jnp.bfloat16), b3p.astype(jnp.float32))


def _pick_tile_b(B: int) -> int:
    """Batch rows per grid step.

    - B <= 512: one block covering the whole batch (block dim == full array
      dim, so no divisibility/padding constraints, no partial block).
    - B  > 512: ~B/2 rounded up to 256, capped at MAX_TILE_B, so the grid has
      >=2 'parallel' steps (lets v7x shard across its 2 TensorCores) while
      amortizing the ~0.35us fixed per-grid-step overhead."""
    if B <= 512:
        return B
    half = (((B + 1) // 2) + 255) // 256 * 256
    return max(256, min(MAX_TILE_B, half))


@jax.jit
def hironaka_net_forward_batched(x, params):
    """x: (B, dim*10) or (B, 10, dim). Returns (B, 5) = [softmax probs(4), reward(1)]."""
    B = x.shape[0]
    x2 = jnp.reshape(x, (B, IN_FEATURES)).astype(jnp.float32)

    w1, b1, w2, b2, w3p, b3p = _pack_params(params)

    tile_b = _pick_tile_b(B)
    const = lambda b: (0, 0)            # weights resident across grid steps
    out = pl.pallas_call(
        _hironaka_kernel,
        out_shape=jax.ShapeDtypeStruct((B, OUT_W), jnp.float32),
        grid=(pl.cdiv(B, tile_b),),     # partial boundary block handled by Pallas
        in_specs=[
            pl.BlockSpec((tile_b, IN_FEATURES), lambda b: (b, 0)),
            pl.BlockSpec((IN_FEATURES, H1), const),
            pl.BlockSpec((1, H1), const),
            pl.BlockSpec((H1, H2), const),
            pl.BlockSpec((1, H2), const),
            pl.BlockSpec((H2, OUT_W), const),
            pl.BlockSpec((1, OUT_W), const),
        ],
        out_specs=pl.BlockSpec((tile_b, OUT_W), lambda b: (b, 0)),
        compiler_params=pltpu.CompilerParams(
            dimension_semantics=("parallel",),
            vmem_limit_bytes=48 * 1024 * 1024),
    )(x2, w1, b1, w2, b2, w3p, b3p)

    return out[:, :OUT_FEATURES]


def hironaka_net_forward(x, params):
    """Module-faithful forward: flatten a single sample (dim*10 elems) -> (5,)."""
    x_row = jnp.reshape(x, (1, IN_FEATURES))
    return hironaka_net_forward_batched(x_row, params)[0]


def _reference_forward(x, params):
    """Pure-JAX reference with the same bf16-weight / f32-accumulate numerics."""
    w1, b1, w2, b2, w3, b3 = params
    x2 = jnp.reshape(x, (-1, IN_FEATURES)).astype(jnp.float32)

    def dot_bf16(a, w):
        return jnp.dot(a.astype(jnp.bfloat16), w.astype(jnp.bfloat16),
                       preferred_element_type=jnp.float32)

    h1 = jnp.maximum(dot_bf16(x2, w1) + b1, 0.0)
    h2 = jnp.maximum(dot_bf16(h1, w2) + b2, 0.0)
    logits = dot_bf16(h2, w3) + b3
    probs = jax.nn.softmax(logits[:, :CHOICES], axis=-1)
    return jnp.concatenate([probs, logits[:, CHOICES:CHOICES + 1]], axis=-1)


if __name__ == "__main__":
    key = jax.random.PRNGKey(0)
    k_params, k_x1, k_xb, k_xl = jax.random.split(key, 4)
    params = init_params(k_params)

    # Module-faithful single sample: 10 points in R^dim.
    x_single = jax.random.normal(k_x1, (10, DIM), dtype=jnp.float32)
    out1 = jax.block_until_ready(hironaka_net_forward(x_single, params))
    assert out1.shape == (OUT_FEATURES,)
    assert abs(float(jnp.sum(out1[:CHOICES])) - 1.0) < 2e-3

    # Small batch: single full block (block dim == batch dim, no padding).
    B1 = 300
    xb = jax.random.normal(k_xb, (B1, 10, DIM), dtype=jnp.float32)
    outb = jax.block_until_ready(hironaka_net_forward_batched(xb, params))
    assert outb.shape == (B1, OUT_FEATURES)
    refb = _reference_forward(xb, params)
    assert bool(jnp.allclose(outb, refb, rtol=1e-2, atol=1e-2))
    assert float(jnp.max(jnp.abs(jnp.sum(outb[:, :CHOICES], axis=-1) - 1.0))) < 2e-3

    # Larger batch: 2 grid steps with a partial boundary block (no jnp.pad).
    B2 = 1300
    xl = jax.random.normal(k_xl, (B2, IN_FEATURES), dtype=jnp.float32)
    outl = jax.block_until_ready(hironaka_net_forward_batched(xl, params))
    assert outl.shape == (B2, OUT_FEATURES)
    refl = _reference_forward(xl, params)
    assert bool(jnp.allclose(outl, refl, rtol=1e-2, atol=1e-2))
    assert float(jnp.max(jnp.abs(jnp.sum(outl[:, :CHOICES], axis=-1) - 1.0))) < 2e-3

    print("KERNEL_OK")
</pallas_src>

<mosaic_0001>
module attributes {stable_mosaic.version = 11 : i64} {
  func.func @_hironaka_kernel(%arg0: i32, %arg1: memref<1x30xf32, #tpu.memory_space<vmem>>, %arg2: memref<30x64xbf16, #tpu.memory_space<vmem>>, %arg3: memref<1x64xf32, #tpu.memory_space<vmem>>, %arg4: memref<64x32xbf16, #tpu.memory_space<vmem>>, %arg5: memref<1x32xf32, #tpu.memory_space<vmem>>, %arg6: memref<32x8xbf16, #tpu.memory_space<vmem>>, %arg7: memref<1x8xf32, #tpu.memory_space<vmem>>, %arg8: memref<1x8xf32, #tpu.memory_space<vmem>>) attributes {dimension_semantics = [#tpu.dimension_semantics<parallel>], iteration_bounds = array<i64: 1>, scalar_prefetch = 0 : i64, scratch_operands = 0 : i64, tpu.core_type = #tpu.core_type<tc>, window_params = [{transform_indices = @transform_0, window_bounds = array<i64: 1, 30>}, {pipeline_mode = #tpu.pipeline_mode<synchronous>, transform_indices = @transform_1, window_bounds = array<i64: 30, 64>}, {pipeline_mode = #tpu.pipeline_mode<synchronous>, transform_indices = @transform_2, window_bounds = array<i64: 1, 64>}, {pipeline_mode = #tpu.pipeline_mode<synchronous>, transform_indices = @transform_3, window_bounds = array<i64: 64, 32>}, {pipeline_mode = #tpu.pipeline_mode<synchronous>, transform_indices = @transform_4, window_bounds = array<i64: 1, 32>}, {pipeline_mode = #tpu.pipeline_mode<synchronous>, transform_indices = @transform_5, window_bounds = array<i64: 32, 8>}, {pipeline_mode = #tpu.pipeline_mode<synchronous>, transform_indices = @transform_6, window_bounds = array<i64: 1, 8>}, {transform_indices = @transform_7, window_bounds = array<i64: 1, 8>}]} {
    %c0 = arith.constant 0 : index
    %c0_0 = arith.constant 0 : index
    %0 = vector.load %arg1[%c0, %c0_0] : memref<1x30xf32, #tpu.memory_space<vmem>>, vector<1x30xf32>
    %1 = arith.truncf %0 : vector<1x30xf32> to vector<1x30xbf16>
    %c0_1 = arith.constant 0 : index
    %c0_2 = arith.constant 0 : index
    %2 = vector.load %arg2[%c0_1, %c0_2] : memref<30x64xbf16, #tpu.memory_space<vmem>>, vector<30x64xbf16>
    %cst = arith.constant dense<0.000000e+00> : vector<1x64xf32>
    %3 = tpu.matmul %1, %2, %cst {dimension_numbers = #tpu.dot_dimension_numbers<[1], [0], [0], [1], [0, 0, 1, 1], [], []>} : vector<1x30xbf16>, vector<30x64xbf16>, vector<1x64xf32> -> vector<1x64xf32>
    %c0_3 = arith.constant 0 : index
    %c0_4 = arith.constant 0 : index
    %4 = vector.load %arg3[%c0_3, %c0_4] : memref<1x64xf32, #tpu.memory_space<vmem>>, vector<1x64xf32>
    %5 = arith.addf %3, %4 : vector<1x64xf32>
    %cst_5 = arith.constant 0.000000e+00 : f32
    %6 = vector.broadcast %cst_5 : f32 to vector<1x64xf32>
    %7 = arith.maximumf %5, %6 : vector<1x64xf32>
    %8 = arith.truncf %7 : vector<1x64xf32> to vector<1x64xbf16>
    %c0_6 = arith.constant 0 : index
    %c0_7 = arith.constant 0 : index
    %9 = vector.load %arg4[%c0_6, %c0_7] : memref<64x32xbf16, #tpu.memory_space<vmem>>, vector<64x32xbf16>
    %cst_8 = arith.constant dense<0.000000e+00> : vector<1x32xf32>
    %10 = tpu.matmul %8, %9, %cst_8 {dimension_numbers = #tpu.dot_dimension_numbers<[1], [0], [0], [1], [0, 0, 1, 1], [], []>} : vector<1x64xbf16>, vector<64x32xbf16>, vector<1x32xf32> -> vector<1x32xf32>
    %c0_9 = arith.constant 0 : index
    %c0_10 = arith.constant 0 : index
    %11 = vector.load %arg5[%c0_9, %c0_10] : memref<1x32xf32, #tpu.memory_space<vmem>>, vector<1x32xf32>
    %12 = arith.addf %10, %11 : vector<1x32xf32>
    %cst_11 = arith.constant 0.000000e+00 : f32
    %13 = vector.broadcast %cst_11 : f32 to vector<1x32xf32>
    %14 = arith.maximumf %12, %13 : vector<1x32xf32>
    %15 = arith.truncf %14 : vector<1x32xf32> to vector<1x32xbf16>
    %c0_12 = arith.constant 0 : index
    %c0_13 = arith.constant 0 : index
    %16 = vector.load %arg6[%c0_12, %c0_13] : memref<32x8xbf16, #tpu.memory_space<vmem>>, vector<32x8xbf16>
    %cst_14 = arith.constant dense<0.000000e+00> : vector<1x8xf32>
    %17 = tpu.matmul %15, %16, %cst_14 {dimension_numbers = #tpu.dot_dimension_numbers<[1], [0], [0], [1], [0, 0, 1, 1], [], []>} : vector<1x32xbf16>, vector<32x8xbf16>, vector<1x8xf32> -> vector<1x8xf32>
    %c0_15 = arith.constant 0 : index
    %c0_16 = arith.constant 0 : index
    %18 = vector.load %arg7[%c0_15, %c0_16] : memref<1x8xf32, #tpu.memory_space<vmem>>, vector<1x8xf32>
    %19 = arith.addf %17, %18 : vector<1x8xf32>
    %20 = vector.extract_strided_slice %19 {offsets = [0, 0], sizes = [1, 4], strides = [1, 1]} : vector<1x8xf32> to vector<1x4xf32>
    %cst_17 = arith.constant dense<0xFF800000> : vector<1xf32>
    %21 = vector.multi_reduction <maximumf>, %20, %cst_17 [1] : vector<1x4xf32> to vector<1xf32>
    %22 = vector.shape_cast %21 : vector<1xf32> to vector<1x1xf32>
    %23 = vector.broadcast %22 : vector<1x1xf32> to vector<1x4xf32>
    %24 = arith.subf %20, %23 : vector<1x4xf32>
    %25 = math.exp %24 : vector<1x4xf32>
    %cst_18 = arith.constant dense<0.000000e+00> : vector<1xf32>
    %26 = vector.multi_reduction <add>, %25, %cst_18 [1] : vector<1x4xf32> to vector<1xf32>
    %27 = vector.shape_cast %26 : vector<1xf32> to vector<1x1xf32>
    %28 = vector.broadcast %27 : vector<1x1xf32> to vector<1x4xf32>
    %29 = arith.divf %25, %28 : vector<1x4xf32>
    %c0_19 = arith.constant 0 : index
    %c0_20 = arith.constant 0 : index
    %30 = vector.load %arg8[%c0_19, %c0_20] : memref<1x8xf32, #tpu.memory_space<vmem>>, vector<1x8xf32>
    tpu.vector_store %arg8[%c0_19, %c0_20], %19 {strides = array<i32>} : memref<1x8xf32, #tpu.memory_space<vmem>>, vector<1x8xf32>,
    %c0_21 = arith.constant 0 : index
    %c0_22 = arith.constant 0 : index
    %31 = vector.load %arg8[%c0_21, %c0_22] : memref<1x8xf32, #tpu.memory_space<vmem>>, vector<1x4xf32>
    tpu.vector_store %arg8[%c0_21, %c0_22], %29 {strides = array<i32>} : memref<1x8xf32, #tpu.memory_space<vmem>>, vector<1x4xf32>,
    return
  }
  func.func @transform_0(%arg0: i32) -> (i32, i32) {
    %c0_i32 = arith.constant 0 : i32
    %c0_i32_0 = arith.constant 0 : i32
    return %arg0, %c0_i32 : i32, i32
  }
  func.func @transform_1(%arg0: i32) -> (i32, i32) {
    %c0_i32 = arith.constant 0 : i32
    %c0_i32_0 = arith.constant 0 : i32
    %c0_i32_1 = arith.constant 0 : i32
    return %c0_i32, %c0_i32_0 : i32, i32
  }
  func.func @transform_2(%arg0: i32) -> (i32, i32) {
    %c0_i32 = arith.constant 0 : i32
    %c0_i32_0 = arith.constant 0 : i32
    %c0_i32_1 = arith.constant 0 : i32
    return %c0_i32, %c0_i32_0 : i32, i32
  }
  func.func @transform_3(%arg0: i32) -> (i32, i32) {
    %c0_i32 = arith.constant 0 : i32
    %c0_i32_0 = arith.constant 0 : i32
    %c0_i32_1 = arith.constant 0 : i32
    return %c0_i32, %c0_i32_0 : i32, i32
  }
  func.func @transform_4(%arg0: i32) -> (i32, i32) {
    %c0_i32 = arith.constant 0 : i32
    %c0_i32_0 = arith.constant 0 : i32
    %c0_i32_1 = arith.constant 0 : i32
    return %c0_i32, %c0_i32_0 : i32, i32
  }
  func.func @transform_5(%arg0: i32) -> (i32, i32) {
    %c0_i32 = arith.constant 0 : i32
    %c0_i32_0 = arith.constant 0 : i32
    %c0_i32_1 = arith.constant 0 : i32
    return %c0_i32, %c0_i32_0 : i32, i32
  }
  func.func @transform_6(%arg0: i32) -> (i32, i32) {
    %c0_i32 = arith.constant 0 : i32
    %c0_i32_0 = arith.constant 0 : i32
    %c0_i32_1 = arith.constant 0 : i32
    return %c0_i32, %c0_i32_0 : i32, i32
  }
  func.func @transform_7(%arg0: i32) -> (i32, i32) {
    %c0_i32 = arith.constant 0 : i32
    %c0_i32_0 = arith.constant 0 : i32
    return %arg0, %c0_i32 : i32, i32
  }
}

</mosaic_0001>

<llo_original>
// kernel: hironaka_net_forward_batched.1
$region0: #{hironaka_net_forward_batched.1}
  #allocation0 [shape = 'u32[]', space=smem, size = 0x4, offset = 0x4, fixed_abs, tag = 'smem constant byte address 0x4 - core index']
  #allocation1 [shape = 'u32[144,128]{1,0:T(1,128)}', space=vmem, size = 0x12000, scoped, tag = 'internal scratch']
  %s0 = inlined_call_operand.vmem [shape: f32[1,30], index: 0, kind: input, shape index: {}]
  %s1 = inlined_call_operand.vmem [shape: bf16[30,64], index: 1, kind: input, shape index: {}]
  %s2 = inlined_call_operand.vmem [shape: f32[1,64], index: 2, kind: input, shape index: {}]
  %s3 = inlined_call_operand.vmem [shape: bf16[64,32], index: 3, kind: input, shape index: {}]
  %s4 = inlined_call_operand.vmem [shape: f32[1,32], index: 4, kind: input, shape index: {}]
  %s5 = inlined_call_operand.vmem [shape: bf16[32,8], index: 5, kind: input, shape index: {}]
  %s6 = inlined_call_operand.vmem [shape: f32[1,8], index: 6, kind: input, shape index: {}]
  %s7 = inlined_call_operand.hbm [shape: f32[1,8], index: 7, kind: output, shape index: {}]
  %s8 = sld [smem:[#allocation0]]
  $region38: #{hironaka_net_forward_batched.1} parent=0
    _
  %s10 = ssub.s32 1, %s8
  %s11 = scalar_select 0, %s10, %s8
  $region1: #{hironaka_net_forward_batched.1} parent=0
    #allocation2 [shape = 'u8[512]{0}', space=vmem, size = 0x400, scoped, tag = 'output window, operand 0, single buffered']
    #allocation3 [shape = 's32[1]{0}', space=sflag, size = 0x4, scoped, tag = 'scoped memory for hironaka_net_forward_batched.1']
    %12 = vsyncpa [#allocation3], 0
    // Predicated region
    $region2: #{hironaka_net_forward_batched.1} parent=1 // pred_check
      _
    $region3: #{hironaka_net_forward_batched.1} parent=1 // pred_check_branch
      %14 = sbr.rel (0) target = $region5
    $region4: #{hironaka_net_forward_batched.1} parent=1 // pred_region
      _
    $region5: #{hironaka_net_forward_batched.1} parent=1 // pred_fallthru
      _
    // Predicated region
    $region6: #{hironaka_net_forward_batched.1} parent=1 // pred_check
      _
    $region7: #{hironaka_net_forward_batched.1} parent=1 // pred_check_branch
      %16 = sbr.rel (0) target = $region9
    $region8: #{hironaka_net_forward_batched.1} parent=1 // pred_region
      _
    $region9: #{hironaka_net_forward_batched.1} parent=1 // pred_fallthru
      _
    // Predicated region
    $region10: #{hironaka_net_forward_batched.1} parent=1 // pred_check
      _
    $region11: #{hironaka_net_forward_batched.1} parent=1 // pred_check_branch
      %18 = sbr.rel (0) target = $region13
    $region12: #{hironaka_net_forward_batched.1} parent=1 // pred_region
      _
    $region13: #{hironaka_net_forward_batched.1} parent=1 // pred_fallthru
      _
    // Predicated region
    $region14: #{hironaka_net_forward_batched.1} parent=1 // pred_check
      _
    $region15: #{hironaka_net_forward_batched.1} parent=1 // pred_check_branch
      %20 = sbr.rel (0) target = $region17
    $region16: #{hironaka_net_forward_batched.1} parent=1 // pred_region
      _
    $region17: #{hironaka_net_forward_batched.1} parent=1 // pred_fallthru
      _
    // Predicated region
    $region18: #{hironaka_net_forward_batched.1} parent=1 // pred_check
      _
    $region19: #{hironaka_net_forward_batched.1} parent=1 // pred_check_branch
      %22 = sbr.rel (0) target = $region21
    $region20: #{hironaka_net_forward_batched.1} parent=1 // pred_region
      _
    $region21: #{hironaka_net_forward_batched.1} parent=1 // pred_fallthru
      _
    // Predicated region
    $region22: #{hironaka_net_forward_batched.1} parent=1 // pred_check
      _
    $region23: #{hironaka_net_forward_batched.1} parent=1 // pred_check_branch
      %24 = sbr.rel (0) target = $region25
    $region24: #{hironaka_net_forward_batched.1} parent=1 // pred_region
      _
    $region25: #{hironaka_net_forward_batched.1} parent=1 // pred_fallthru
      _
    // Predicated region
    $region26: #{hironaka_net_forward_batched.1} parent=1 // pred_check
      _
    $region27: #{hironaka_net_forward_batched.1} parent=1 // pred_check_branch
      %26 = sbr.rel (0) target = $region29
    $region28: #{hironaka_net_forward_batched.1} parent=1 // pred_region
      _
    $region29: #{hironaka_net_forward_batched.1} parent=1 // pred_fallthru
      _
    %v28 = vld [vmem:[%s0] sm:$0x1]
    %v29 = vpack.c.bf16 %v28, %v28
    %v30 = vld [vmem:[%s1] sm:$0xf]
    %v31 = vld [vmem:[%s1 + $0x4] sm:$0xf]
    %v32 = vld [vmem:[%s1 + $0x8] sm:$0xf]
    %v33 = vld [vmem:[%s1 + $0xc] sm:$0x7]
    %v34 = vld [vmem:[%s2] sm:$0x1]
    %v39 = vunpack.c.l.b16 %v30
    %v40 = vunpack.c.l.b16 %v31
    %v41 = vunpack.c.l.b16 %v32
    %v42 = vunpack.c.l.b16 %v33
    %v43 = vpack.c.b16 %v40, %v39
    %v44 = vpack.c.b16 %v42, %v41
    %vm46 = vcmask 244736
    %v48 = vsel %vm46, %v29, 0
    %vm50 = vcmask 1046528
    %v52 = vsel %vm50, %v44, 0
    %54 = vmatprep.subr.bf16.mxu0 0
    %55 = vmatpush1.bf16.msra.mxu0 %v43
    %56 = vmatprep.subr.bf16.mxu0 0
    %57 = vmatpush1.bf16.msra.mxu0 %v52
    %58 = vmatprep.subr.bf16.mxu0 0
    %59 = vmatpush1.bf16.msra.mxu0 0
    %60 = vmatprep.subr.bf16.mxu0 0
    %61 = vmatpush1.bf16.msra.mxu0 0
    %62 = vmatprep.subr.bf16.mxu0 0
    %63 = vmatpush1.bf16.msra.mxu0 0
    %64 = vmatprep.subr.bf16.mxu0 0
    %65 = vmatpush1.bf16.msra.mxu0 0
    %66 = vmatprep.subr.bf16.mxu0 0
    %67 = vmatpush1.bf16.msra.mxu0 0
    %68 = vmatprep.subr.bf16.mxu0 0
    %69 = vmatpush1.bf16.msra.mxu0 0
    %70 = vmatprep.subr.bf16.mxu0 0
    %71 = vmatpush1.bf16.msra.mxu0 0
    %72 = vmatprep.subr.bf16.mxu0 0
    %73 = vmatpush1.bf16.msra.mxu0 0
    %74 = vmatprep.subr.bf16.mxu0 0
    %75 = vmatpush1.bf16.msra.mxu0 0
    %76 = vmatprep.subr.bf16.mxu0 0
    %77 = vmatpush1.bf16.msra.mxu0 0
    %78 = vmatprep.subr.bf16.mxu0 0
    %79 = vmatpush1.bf16.msra.mxu0 0
    %80 = vmatprep.subr.bf16.mxu0 0
    %81 = vmatpush1.bf16.msra.mxu0 0
    %82 = vmatprep.subr.bf16.mxu0 0
    %83 = vmatpush1.bf16.msra.mxu0 0
    %84 = vmatprep.subr.bf16.mxu0 0
    %85 = vmatpush1.bf16.msra.mxu0 0
    %86 = vmatprep.mubr.bf16.mxu0 0
    %87 = vmatmul.mubr.bf16.gmra.mrb[0].mxu0 %v48
    %v88 = vpop.f32.mrb[0].mxu0
    %v89 = vadd.f32 %v34, %v88
    %v90 = vpop.f32.mrb[0].mxu0
    %v91 = vpop.f32.mrb[0].mxu0
    %v92 = vpop.f32.mrb[0].mxu0
    %93 = vdwg.mxu0
    %v94 = vmax.f32 %v89, 0.0
    %v95 = vpack.c.bf16 %v94, %v94
    %v96 = vld [vmem:[%s3] sm:$0xf]
    %v97 = vld [vmem:[%s3 + $0x4] sm:$0xf]
    %v98 = vld [vmem:[%s3 + $0x8] sm:$0xf]
    %v99 = vld [vmem:[%s3 + $0xc] sm:$0xf]
    %v100 = vld [vmem:[%s3 + $0x10] sm:$0xf]
    %v101 = vld [vmem:[%s3 + $0x14] sm:$0xf]
    %v102 = vld [vmem:[%s3 + $0x18] sm:$0xf]
    %v103 = vld [vmem:[%s3 + $0x1c] sm:$0xf]
    %v104 = vld [vmem:[%s4] sm:$0x1]
    %v113 = vunpack.c.l.b16 %v96
    %v114 = vunpack.c.l.b16 %v97
    %v115 = vunpack.c.l.b16 %v98
    %v116 = vunpack.c.l.b16 %v99
    %v117 = vunpack.c.l.b16 %v100
    %v118 = vunpack.c.l.b16 %v101
    %v119 = vunpack.c.l.b16 %v102
    %v120 = vunpack.c.l.b16 %v103
    %v121 = vpack.c.b16 %v114, %v113
    %v122 = vpack.c.b16 %v116, %v115
    %v123 = vpack.c.b16 %v118, %v117
    %v124 = vpack.c.b16 %v120, %v119
    %vm129 = vcmask 523264
    %v131 = vsel %vm129, %v95, 0
    %133 = vmatprep.subr.bf16.mxu0 0
    %134 = vmatpush1.bf16.msra.mxu0 %v121
    %135 = vmatprep.subr.bf16.mxu0 0
    %136 = vmatpush1.bf16.msra.mxu0 %v122
    %137 = vmatprep.subr.bf16.mxu0 0
    %138 = vmatpush1.bf16.msra.mxu0 %v123
    %139 = vmatprep.subr.bf16.mxu0 0
    %140 = vmatpush1.bf16.msra.mxu0 %v124
    %141 = vmatprep.subr.bf16.mxu0 0
    %142 = vmatpush1.bf16.msra.mxu0 0
    %143 = vmatprep.subr.bf16.mxu0 0
    %144 = vmatpush1.bf16.msra.mxu0 0
    %145 = vmatprep.subr.bf16.mxu0 0
    %146 = vmatpush1.bf16.msra.mxu0 0
    %147 = vmatprep.subr.bf16.mxu0 0
    %148 = vmatpush1.bf16.msra.mxu0 0
    %149 = vmatprep.subr.bf16.mxu0 0
    %150 = vmatpush1.bf16.msra.mxu0 0
    %151 = vmatprep.subr.bf16.mxu0 0
    %152 = vmatpush1.bf16.msra.mxu0 0
    %153 = vmatprep.subr.bf16.mxu0 0
    %154 = vmatpush1.bf16.msra.mxu0 0
    %155 = vmatprep.subr.bf16.mxu0 0
    %156 = vmatpush1.bf16.msra.mxu0 0
    %157 = vmatprep.subr.bf16.mxu0 0
    %158 = vmatpush1.bf16.msra.mxu0 0
    %159 = vmatprep.subr.bf16.mxu0 0
    %160 = vmatpush1.bf16.msra.mxu0 0
    %161 = vmatprep.subr.bf16.mxu0 0
    %162 = vmatpush1.bf16.msra.mxu0 0
    %163 = vmatprep.subr.bf16.mxu0 0
    %164 = vmatpush1.bf16.msra.mxu0 0
    %165 = vmatprep.mubr.bf16.mxu0 0
    %166 = vmatmul.mubr.bf16.gmra.mrb[0].mxu0 %v131
    %v167 = vpop.f32.mrb[0].mxu0
    %v168 = vadd.f32 %v104, %v167
    %v169 = vpop.f32.mrb[0].mxu0
    %v170 = vpop.f32.mrb[0].mxu0
    %v171 = vpop.f32.mrb[0].mxu0
    %172 = vdwg.mxu0
    %v173 = vmax.f32 %v168, 0.0
    %v174 = vpack.c.bf16 %v173, %v173
    %v175 = vld [vmem:[%s5] sm:$0xf]
    %v176 = vld [vmem:[%s5 + $0x4] sm:$0xf]
    %v177 = vld [vmem:[%s5 + $0x8] sm:$0xf]
    %v178 = vld [vmem:[%s5 + $0xc] sm:$0xf]
    %v179 = vld [vmem:[%s6] sm:$0x1]
    %v184 = vunpack.c.l.b16 %v175
    %v185 = vunpack.c.l.b16 %v176
    %v186 = vunpack.c.l.b16 %v177
    %v187 = vunpack.c.l.b16 %v178
    %v188 = vpack.c.b16 %v185, %v184
    %v189 = vpack.c.b16 %v187, %v186
    %vm192 = vcmask 261120
    %v194 = vsel %vm192, %v174, 0
    %196 = vmatprep.subr.bf16.mxu0 0
    %197 = vmatpush1.bf16.msra.mxu0 %v188
    %198 = vmatprep.subr.bf16.mxu0 0
    %199 = vmatpush1.bf16.msra.mxu0 %v189
    %200 = vmatprep.subr.bf16.mxu0 0
    %201 = vmatpush1.bf16.msra.mxu0 0
    %202 = vmatprep.subr.bf16.mxu0 0
    %203 = vmatpush1.bf16.msra.mxu0 0
    %204 = vmatprep.subr.bf16.mxu0 0
    %205 = vmatpush1.bf16.msra.mxu0 0
    %206 = vmatprep.subr.bf16.mxu0 0
    %207 = vmatpush1.bf16.msra.mxu0 0
    %208 = vmatprep.subr.bf16.mxu0 0
    %209 = vmatpush1.bf16.msra.mxu0 0
    %210 = vmatprep.subr.bf16.mxu0 0
    %211 = vmatpush1.bf16.msra.mxu0 0
    %212 = vmatprep.subr.bf16.mxu0 0
    %213 = vmatpush1.bf16.msra.mxu0 0
    %214 = vmatprep.subr.bf16.mxu0 0
    %215 = vmatpush1.bf16.msra.mxu0 0
    %216 = vmatprep.subr.bf16.mxu0 0
    %217 = vmatpush1.bf16.msra.mxu0 0
    %218 = vmatprep.subr.bf16.mxu0 0
    %219 = vmatpush1.bf16.msra.mxu0 0
    %220 = vmatprep.subr.bf16.mxu0 0
    %221 = vmatpush1.bf16.msra.mxu0 0
    %222 = vmatprep.subr.bf16.mxu0 0
    %223 = vmatpush1.bf16.msra.mxu0 0
    %224 = vmatprep.subr.bf16.mxu0 0
    %225 = vmatpush1.bf16.msra.mxu0 0
    %226 = vmatprep.subr.bf16.mxu0 0
    %227 = vmatpush1.bf16.msra.mxu0 0
    %228 = vmatprep.mubr.bf16.mxu0 0
    %229 = vmatmul.mubr.bf16.gmra.mrb[0].mxu0 %v194
    %v230 = vpop.f32.mrb[0].mxu0
    %v231 = vadd.f32 %v179, %v230
    %v232 = vpop.f32.mrb[0].mxu0
    %v233 = vpop.f32.mrb[0].mxu0
    %v234 = vpop.f32.mrb[0].mxu0
    %235 = vdwg.mxu0
    %vm236 = vcmask 24576
    %v237 = vsel %vm236, %v231, -inf
    %238 = vmax.xlane.f32.xlu0 %v237
    %v239 = vpop.xlane.xlu0 %238
    %v240 = vsub.f32 %v231, %v239
    %v241 = vmul.f32 %v240, 1.442695
    %v242 = vpow.pop %v241
    %v243 = vsel %vm236, %v242, 0.0
    %244 = vadd.xlane.f32.xlu0 %v243
    %v245 = vpop.xlane.xlu0 %244
    %v246 = vrcp.pop %v245
    %v247 = vmul.f32 %v242, %v246
    %vm248 = vcmask 57344
    %249 = vst.msk [vmem:[#allocation2] sm:$0x1] %vm248, %v231
    %250 = vst.msk [vmem:[#allocation2] sm:$0x1] %vm236, %v247
    // Predicated region
    $region30: #{hironaka_net_forward_batched.1} parent=1 // pred_check
      _
    $region31: #{hironaka_net_forward_batched.1} parent=1 // pred_check_branch
      %252 = sbr.rel (0) target = $region33
    $region32: #{hironaka_net_forward_batched.1} parent=1 // pred_region
      %s254 = ssub.s32 16, 16
      %255 = vsyncadd [#allocation3], %s254
      %s257 = sshll.u32 [#allocation2], 4
      %s258 = int_to_ptr.vmem [resolvable:$true] %s257
      %260 = dma.vmem_to_hbm [thread:$0]  %s258, 16, %s7, [#allocation3]
    $region33: #{hironaka_net_forward_batched.1} parent=1 // pred_fallthru
      _
    // Predicated region
    $region34: #{hironaka_net_forward_batched.1} parent=1 // pred_check
      _
    $region35: #{hironaka_net_forward_batched.1} parent=1 // pred_check_branch
      %262 = sbr.rel (0) target = $region37
    $region36: #{hironaka_net_forward_batched.1} parent=1 // pred_region
      %263 = dma.done [#allocation3], 16
    $region37: #{hironaka_net_forward_batched.1} parent=1 // pred_fallthru
      _
    %264 = vsyncpa [#allocation3], 1

</llo_original>
